<compile_context>
chip_gen: v7x
topology: tpu7x:2x2x1
jax: 0.10.0
libtpu: 0.0.40
codegen_flags: <defaults>
</compile_context>

<pallas_src>
import jax
import jax.numpy as jnp
import numpy as np
from jax.experimental import pallas as pl
from jax.experimental.pallas import tpu as pltpu


def residual_block_kernel(x_ref, w1_ref, b1_ref, w2_ref, b2_ref, o_ref):
    # x_ref: (TB, size) f32   w1_ref: (size, bneck) bf16   b1_ref: (1, bneck) f32
    # w2_ref: (bneck, size) bf16   b2_ref: (1, size) f32   o_ref: (TB, size) f32
    x = x_ref[...]

    # Linear(size, bneck) + ReLU   (bf16 MXU matmul, f32 accumulate)
    h = jnp.dot(x.astype(jnp.bfloat16), w1_ref[...],
                preferred_element_type=jnp.float32) + b1_ref[...]
    h = jnp.maximum(h, 0.0)

    # Linear(bneck, size)
    y = jnp.dot(h.astype(jnp.bfloat16), w2_ref[...],
                preferred_element_type=jnp.float32) + b2_ref[...]

    # residual add + final ReLU (f32 VPU work)
    o_ref[...] = jnp.maximum(y + x, 0.0)


def residual_block_forward(x, w1, b1, w2, b2, *, tb=None):
    """x: (B, size) f32; w1: (size, bneck) bf16; b1: (1, bneck) f32;
       w2: (bneck, size) bf16; b2: (1, size) f32."""
    B, size = x.shape
    bneck = w1.shape[1]
    if tb is None:
        tb = min(B, 256)
    assert B % tb == 0, "batch must be divisible by the batch tile"
    grid = (B // tb,)

    in_specs = [
        pl.BlockSpec((tb, size), lambda i: (i, 0)),      # x: tiled over batch
        pl.BlockSpec((size, bneck), lambda i: (0, 0)),   # w1: resident
        pl.BlockSpec((1, bneck), lambda i: (0, 0)),      # b1: resident
        pl.BlockSpec((bneck, size), lambda i: (0, 0)),   # w2: resident
        pl.BlockSpec((1, size), lambda i: (0, 0)),       # b2: resident
    ]
    out_specs = pl.BlockSpec((tb, size), lambda i: (i, 0))

    return pl.pallas_call(
        residual_block_kernel,
        out_shape=jax.ShapeDtypeStruct((B, size), jnp.float32),
        grid=grid,
        in_specs=in_specs,
        out_specs=out_specs,
        compiler_params=pltpu.CompilerParams(
            dimension_semantics=("parallel",),        # shard batch tiles across TCs (v7x)
            vmem_limit_bytes=64 * 1024 * 1024,        # explicit budget, safe on v7x 64 MiB VMEM
        ),
    )(x, w1, b1, w2, b2)


def init_params(size, key, bottleneck=False):
    """Mirror PyTorch nn.Linear default init; weights stored (in, out), bf16 for the MXU."""
    bneck = size // 2 if bottleneck else size
    k1w, k1b, k2w, k2b = jax.random.split(key, 4)

    bound1 = 1.0 / np.sqrt(size)
    w1 = jax.random.uniform(k1w, (size, bneck), minval=-bound1, maxval=bound1)
    b1 = jax.random.uniform(k1b, (1, bneck), minval=-bound1, maxval=bound1)

    bound2 = 1.0 / np.sqrt(bneck)
    w2 = jax.random.uniform(k2w, (bneck, size), minval=-bound2, maxval=bound2)
    b2 = jax.random.uniform(k2b, (1, size), minval=-bound2, maxval=bound2)

    return (w1.astype(jnp.bfloat16), b1.astype(jnp.float32),
            w2.astype(jnp.bfloat16), b2.astype(jnp.float32))


def reference_forward(x, w1, b1, w2, b2):
    """Plain-JAX reference with the same bf16-matmul / f32-accumulate recipe."""
    h = jnp.dot(x.astype(jnp.bfloat16), w1, preferred_element_type=jnp.float32) + b1
    h = jnp.maximum(h, 0.0)
    y = jnp.dot(h.astype(jnp.bfloat16), w2, preferred_element_type=jnp.float32) + b2
    return jnp.maximum(y + x, 0.0)


if __name__ == "__main__":
    key = jax.random.PRNGKey(0)
    k_x, k_par = jax.random.split(key)

    # Small but lane-aligned sizes: size=128 (one full lane row), batch=64, tile=16 -> grid (4,)
    size = 128
    batch = 64
    tb = 16

    x = jax.random.normal(k_x, (batch, size), dtype=jnp.float32)
    w1, b1, w2, b2 = init_params(size, k_par, bottleneck=False)

    out = residual_block_forward(x, w1, b1, w2, b2, tb=tb)
    jax.block_until_ready(out)

    ref = reference_forward(x, w1, b1, w2, b2)
    np.testing.assert_allclose(np.asarray(out), np.asarray(ref), rtol=1e-3, atol=1e-3)
    assert out.shape == (batch, size)

    print("KERNEL_OK")
</pallas_src>

<mosaic_0001>
module attributes {stable_mosaic.version = 11 : i64} {
  func.func @residual_block_kernel(%arg0: i32, %arg1: memref<16x128xf32, #tpu.memory_space<vmem>>, %arg2: memref<128x128xbf16, #tpu.memory_space<vmem>>, %arg3: memref<1x128xf32, #tpu.memory_space<vmem>>, %arg4: memref<128x128xbf16, #tpu.memory_space<vmem>>, %arg5: memref<1x128xf32, #tpu.memory_space<vmem>>, %arg6: memref<16x128xf32, #tpu.memory_space<vmem>>) attributes {dimension_semantics = [#tpu.dimension_semantics<parallel>], iteration_bounds = array<i64: 4>, scalar_prefetch = 0 : i64, scratch_operands = 0 : i64, tpu.core_type = #tpu.core_type<tc>, window_params = [{transform_indices = @transform_0, window_bounds = array<i64: 16, 128>}, {pipeline_mode = #tpu.pipeline_mode<synchronous>, transform_indices = @transform_1, window_bounds = array<i64: 128, 128>}, {pipeline_mode = #tpu.pipeline_mode<synchronous>, transform_indices = @transform_2, window_bounds = array<i64: 1, 128>}, {pipeline_mode = #tpu.pipeline_mode<synchronous>, transform_indices = @transform_3, window_bounds = array<i64: 128, 128>}, {pipeline_mode = #tpu.pipeline_mode<synchronous>, transform_indices = @transform_4, window_bounds = array<i64: 1, 128>}, {transform_indices = @transform_5, window_bounds = array<i64: 16, 128>}]} {
    %c0 = arith.constant 0 : index
    %c0_0 = arith.constant 0 : index
    %0 = vector.load %arg1[%c0, %c0_0] : memref<16x128xf32, #tpu.memory_space<vmem>>, vector<16x128xf32>
    %1 = arith.truncf %0 : vector<16x128xf32> to vector<16x128xbf16>
    %c0_1 = arith.constant 0 : index
    %c0_2 = arith.constant 0 : index
    %2 = vector.load %arg2[%c0_1, %c0_2] : memref<128x128xbf16, #tpu.memory_space<vmem>>, vector<128x128xbf16>
    %cst = arith.constant dense<0.000000e+00> : vector<16x128xf32>
    %3 = tpu.matmul %1, %2, %cst {dimension_numbers = #tpu.dot_dimension_numbers<[1], [0], [0], [1], [0, 0, 1, 1], [], []>} : vector<16x128xbf16>, vector<128x128xbf16>, vector<16x128xf32> -> vector<16x128xf32>
    %c0_3 = arith.constant 0 : index
    %c0_4 = arith.constant 0 : index
    %4 = vector.load %arg3[%c0_3, %c0_4] : memref<1x128xf32, #tpu.memory_space<vmem>>, vector<1x128xf32>
    %5 = vector.broadcast %4 : vector<1x128xf32> to vector<16x128xf32>
    %6 = arith.addf %3, %5 : vector<16x128xf32>
    %cst_5 = arith.constant 0.000000e+00 : f32
    %7 = vector.broadcast %cst_5 : f32 to vector<16x128xf32>
    %8 = arith.maximumf %6, %7 : vector<16x128xf32>
    %9 = arith.truncf %8 : vector<16x128xf32> to vector<16x128xbf16>
    %c0_6 = arith.constant 0 : index
    %c0_7 = arith.constant 0 : index
    %10 = vector.load %arg4[%c0_6, %c0_7] : memref<128x128xbf16, #tpu.memory_space<vmem>>, vector<128x128xbf16>
    %cst_8 = arith.constant dense<0.000000e+00> : vector<16x128xf32>
    %11 = tpu.matmul %9, %10, %cst_8 {dimension_numbers = #tpu.dot_dimension_numbers<[1], [0], [0], [1], [0, 0, 1, 1], [], []>} : vector<16x128xbf16>, vector<128x128xbf16>, vector<16x128xf32> -> vector<16x128xf32>
    %c0_9 = arith.constant 0 : index
    %c0_10 = arith.constant 0 : index
    %12 = vector.load %arg5[%c0_9, %c0_10] : memref<1x128xf32, #tpu.memory_space<vmem>>, vector<1x128xf32>
    %13 = vector.broadcast %12 : vector<1x128xf32> to vector<16x128xf32>
    %14 = arith.addf %11, %13 : vector<16x128xf32>
    %15 = arith.addf %14, %0 : vector<16x128xf32>
    %cst_11 = arith.constant 0.000000e+00 : f32
    %16 = vector.broadcast %cst_11 : f32 to vector<16x128xf32>
    %17 = arith.maximumf %15, %16 : vector<16x128xf32>
    %c0_12 = arith.constant 0 : index
    %c0_13 = arith.constant 0 : index
    %18 = vector.load %arg6[%c0_12, %c0_13] : memref<16x128xf32, #tpu.memory_space<vmem>>, vector<16x128xf32>
    tpu.vector_store %arg6[%c0_12, %c0_13], %17 {strides = array<i32>} : memref<16x128xf32, #tpu.memory_space<vmem>>, vector<16x128xf32>,
    return
  }
  func.func @transform_0(%arg0: i32) -> (i32, i32) {
    %c0_i32 = arith.constant 0 : i32
    %c0_i32_0 = arith.constant 0 : i32
    return %arg0, %c0_i32 : i32, i32
  }
  func.func @transform_1(%arg0: i32) -> (i32, i32) {
    %c0_i32 = arith.constant 0 : i32
    %c0_i32_0 = arith.constant 0 : i32
    %c0_i32_1 = arith.constant 0 : i32
    return %c0_i32, %c0_i32_0 : i32, i32
  }
  func.func @transform_2(%arg0: i32) -> (i32, i32) {
    %c0_i32 = arith.constant 0 : i32
    %c0_i32_0 = arith.constant 0 : i32
    %c0_i32_1 = arith.constant 0 : i32
    return %c0_i32, %c0_i32_0 : i32, i32
  }
  func.func @transform_3(%arg0: i32) -> (i32, i32) {
    %c0_i32 = arith.constant 0 : i32
    %c0_i32_0 = arith.constant 0 : i32
    %c0_i32_1 = arith.constant 0 : i32
    return %c0_i32, %c0_i32_0 : i32, i32
  }
  func.func @transform_4(%arg0: i32) -> (i32, i32) {
    %c0_i32 = arith.constant 0 : i32
    %c0_i32_0 = arith.constant 0 : i32
    %c0_i32_1 = arith.constant 0 : i32
    return %c0_i32, %c0_i32_0 : i32, i32
  }
  func.func @transform_5(%arg0: i32) -> (i32, i32) {
    %c0_i32 = arith.constant 0 : i32
    %c0_i32_0 = arith.constant 0 : i32
    return %arg0, %c0_i32 : i32, i32
  }
}

</mosaic_0001>

<llo_original>
// kernel: tpu_custom_call.1
$region0: #{tpu_custom_call.1}
  #allocation0 [shape = 'u32[]', space=smem, size = 0x4, offset = 0x4, fixed_abs, tag = 'smem constant byte address 0x4 - core index']
  #allocation1 [shape = 'u32[144,128]{1,0:T(1,128)}', space=vmem, size = 0x12000, scoped, tag = 'internal scratch']
  %s0 = inlined_call_operand.hbm [shape: f32[64,128], index: 0, kind: input, shape index: {}]
  %s1 = inlined_call_operand.hbm [shape: bf16[128,128], index: 1, kind: input, shape index: {}]
  %s2 = inlined_call_operand.hbm [shape: f32[1,128], index: 2, kind: input, shape index: {}]
  %s3 = inlined_call_operand.hbm [shape: bf16[128,128], index: 3, kind: input, shape index: {}]
  %s4 = inlined_call_operand.hbm [shape: f32[1,128], index: 4, kind: input, shape index: {}]
  %s5 = inlined_call_operand.hbm [shape: f32[64,128], index: 5, kind: output, shape index: {}]
  %s6 = sld [smem:[#allocation0]]
  $region73: #{tpu_custom_call.1} parent=0
    _
  %s8 = ssub.s32 1, %s6
  %s9 = scalar_select 0, %s8, %s6
  $region1: #{tpu_custom_call.1} parent=0
    #allocation2 [shape = 'u8[16384]{0}', space=vmem, size = 0x4000, scoped, tag = 'input window, operand 0']
    #allocation3 [shape = 's32[2]{0}', space=sflag, size = 0x8, scoped, tag = 'scoped memory for tpu_custom_call.1']
    #allocation4 [shape = 's32[2]{0}', space=sflag, size = 0x8, scoped, tag = 'scoped memory for tpu_custom_call.1']
    #allocation5 [shape = 'u8[32768]{0}', space=vmem, size = 0x8000, scoped, tag = 'input window, operand 1, single buffered']
    #allocation6 [shape = 's32[1]{0}', space=sflag, size = 0x4, scoped, tag = 'scoped memory for tpu_custom_call.1']
    #allocation7 [shape = 'u8[512]{0}', space=vmem, size = 0x400, scoped, tag = 'input window, operand 2, single buffered']
    #allocation8 [shape = 'u8[32768]{0}', space=vmem, size = 0x8000, scoped, tag = 'input window, operand 3, single buffered']
    #allocation9 [shape = 's32[1]{0}', space=sflag, size = 0x4, scoped, tag = 'scoped memory for tpu_custom_call.1']
    #allocation10 [shape = 'u8[512]{0}', space=vmem, size = 0x400, scoped, tag = 'input window, operand 4, single buffered']
    #allocation11 [shape = 'u8[16384]{0}', space=vmem, size = 0x4000, scoped, tag = 'output window, operand 0']
    %10 = vsyncpa [#allocation3], 0
    %s11 = scalar_lea.sflag [#allocation3], 1
    %12 = vsyncpa %s11, 0
    %13 = vsyncpa [#allocation6], 0
    %14 = vsyncpa [#allocation9], 0
    %15 = vsyncpa [#allocation4], 0
    %s16 = scalar_lea.sflag [#allocation4], 1
    %17 = vsyncpa %s16, 0
    loop: start=0, step=1, limit=6
    $region2: #{tpu_custom_call.1} parent=1 // loop_pre_header
      _
    $region3: #{tpu_custom_call.1} parent=1 // loop_header
      %s19 = sphi 0, %s23
      %p20 = scmp.ge.s32.totalorder %s19, 6
      %s29 = sphi 0, %s31
      %s32 = sphi 0, %s29
      %s33 = sphi 0, %s32
      %s49 = sphi 0, %s33
      %s53 = sphi 0, %s53
      %s55 = sphi 0, %s53
      %s56 = sphi 0, %s55
      %s70 = sphi 0, %s56
      %s74 = sphi 0, %s74
      %s76 = sphi 0, %s74
      %s77 = sphi 0, %s76
      %s91 = sphi 0, %s77
      %s95 = sphi 0, %s95
      %s97 = sphi 0, %s95
      %s98 = sphi 0, %s97
      %s112 = sphi 0, %s98
      %s116 = sphi 0, %s116
      %s118 = sphi 0, %s116
      %s119 = sphi 0, %s118
      %s133 = sphi 0, %s119
      %s139 = sphi 0, %s141
      %s142 = sphi 0, %s139
      %s143 = sphi 0, %s142
      %s159 = sphi 0, %s143
    $region4: #{tpu_custom_call.1} parent=1 // loop_header_branch
      %22 = sbr.rel (%p20) target = $region8
    $region5: #{tpu_custom_call.1} parent=1 // loop_body
      %s24 = ssub.s32 %s19, 1
      %s25 = ssub.s32 %s19, 2
      %s26 = sadd.s32 %s19, 1
      %s27 = ssub.s32 %s19, %s26
      %p28 = scmp.eq.s32.totalorder %s27, 0
      %s30 = sadd.s32 %s29, 1
      %s31 = scalar_select %p28, %s29, %s30
      %p34 = pneg %p28
      %p35 = scmp.eq.s32.totalorder %s19, 3
      %p36 = por %p34, %p35
      %p37 = scmp.ne.s32.totalorder %s29, %s32
      %p38 = scmp.eq.s32.totalorder %s19, 0
      %p39 = por %p37, %p38
      %p40 = scmp.ne.s32.totalorder %s29, %s32
      %p41 = scmp.eq.s32.totalorder %s24, 3
      %p42 = por %p40, %p41
      %p43 = scmp.ne.s32.totalorder %s32, %s33
      %p44 = scmp.eq.s32.totalorder %s24, 0
      %p45 = por %p43, %p44
      %p46 = scmp.ne.s32.totalorder %s32, %s33
      %p47 = scmp.eq.s32.totalorder %s25, 3
      %p48 = por %p46, %p47
      %p50 = scmp.ne.s32.totalorder %s33, %s49
      %p51 = scmp.eq.s32.totalorder %s25, 0
      %p52 = por %p50, %p51
      %s54 = sadd.s32 %s53, 1
      %p57 = scmp.eq.s32.totalorder %s19, 3
      %p58 = scmp.ne.s32.totalorder %s53, %s55
      %p59 = scmp.eq.s32.totalorder %s19, 0
      %p60 = por %p58, %p59
      %p61 = scmp.ne.s32.totalorder %s53, %s55
      %p62 = scmp.eq.s32.totalorder %s24, 3
      %p63 = por %p61, %p62
      %p64 = scmp.ne.s32.totalorder %s55, %s56
      %p65 = scmp.eq.s32.totalorder %s24, 0
      %p66 = por %p64, %p65
      %p67 = scmp.ne.s32.totalorder %s55, %s56
      %p68 = scmp.eq.s32.totalorder %s25, 3
      %p69 = por %p67, %p68
      %p71 = scmp.ne.s32.totalorder %s56, %s70
      %p72 = scmp.eq.s32.totalorder %s25, 0
      %p73 = por %p71, %p72
      %s75 = sadd.s32 %s74, 1
      %p78 = scmp.eq.s32.totalorder %s19, 3
      %p79 = scmp.ne.s32.totalorder %s74, %s76
      %p80 = scmp.eq.s32.totalorder %s19, 0
      %p81 = por %p79, %p80
      %p82 = scmp.ne.s32.totalorder %s74, %s76
      %p83 = scmp.eq.s32.totalorder %s24, 3
      %p84 = por %p82, %p83
      %p85 = scmp.ne.s32.totalorder %s76, %s77
      %p86 = scmp.eq.s32.totalorder %s24, 0
      %p87 = por %p85, %p86
      %p88 = scmp.ne.s32.totalorder %s76, %s77
      %p89 = scmp.eq.s32.totalorder %s25, 3
      %p90 = por %p88, %p89
      %p92 = scmp.ne.s32.totalorder %s77, %s91
      %p93 = scmp.eq.s32.totalorder %s25, 0
      %p94 = por %p92, %p93
      %s96 = sadd.s32 %s95, 1
      %p99 = scmp.eq.s32.totalorder %s19, 3
      %p100 = scmp.ne.s32.totalorder %s95, %s97
      %p101 = scmp.eq.s32.totalorder %s19, 0
      %p102 = por %p100, %p101
      %p103 = scmp.ne.s32.totalorder %s95, %s97
      %p104 = scmp.eq.s32.totalorder %s24, 3
      %p105 = por %p103, %p104
      %p106 = scmp.ne.s32.totalorder %s97, %s98
      %p107 = scmp.eq.s32.totalorder %s24, 0
      %p108 = por %p106, %p107
      %p109 = scmp.ne.s32.totalorder %s97, %s98
      %p110 = scmp.eq.s32.totalorder %s25, 3
      %p111 = por %p109, %p110
      %p113 = scmp.ne.s32.totalorder %s98, %s112
      %p114 = scmp.eq.s32.totalorder %s25, 0
      %p115 = por %p113, %p114
      %s117 = sadd.s32 %s116, 1
      %p120 = scmp.eq.s32.totalorder %s19, 3
      %p121 = scmp.ne.s32.totalorder %s116, %s118
      %p122 = scmp.eq.s32.totalorder %s19, 0
      %p123 = por %p121, %p122
      %p124 = scmp.ne.s32.totalorder %s116, %s118
      %p125 = scmp.eq.s32.totalorder %s24, 3
      %p126 = por %p124, %p125
      %p127 = scmp.ne.s32.totalorder %s118, %s119
      %p128 = scmp.eq.s32.totalorder %s24, 0
      %p129 = por %p127, %p128
      %p130 = scmp.ne.s32.totalorder %s118, %s119
      %p131 = scmp.eq.s32.totalorder %s25, 3
      %p132 = por %p130, %p131
      %p134 = scmp.ne.s32.totalorder %s119, %s133
      %p135 = scmp.eq.s32.totalorder %s25, 0
      %p136 = por %p134, %p135
      %s137 = ssub.s32 %s19, %s26
      %p138 = scmp.eq.s32.totalorder %s137, 0
      %s140 = sadd.s32 %s139, 1
      %s141 = scalar_select %p138, %s139, %s140
      %p144 = pneg %p138
      %p145 = scmp.eq.s32.totalorder %s19, 3
      %p146 = por %p144, %p145
      %p147 = scmp.ne.s32.totalorder %s139, %s142
      %p148 = scmp.eq.s32.totalorder %s19, 0
      %p149 = por %p147, %p148
      %p150 = scmp.ne.s32.totalorder %s139, %s142
      %p151 = scmp.eq.s32.totalorder %s24, 3
      %p152 = por %p150, %p151
      %p153 = scmp.ne.s32.totalorder %s142, %s143
      %p154 = scmp.eq.s32.totalorder %s24, 0
      %p155 = por %p153, %p154
      %p156 = scmp.ne.s32.totalorder %s142, %s143
      %p157 = scmp.eq.s32.totalorder %s25, 3
      %p158 = por %p156, %p157
      %p160 = scmp.ne.s32.totalorder %s143, %s159
      %p161 = scmp.eq.s32.totalorder %s25, 0
      %p162 = por %p160, %p161
      %p163 = scmp.le.s32.totalorder 1, %s19
      %p164 = scmp.lt.s32.totalorder %s19, 5
      %p165 = pnand %p163, %p164
      %p166 = pneg %p165
      // Predicated region
      $region9: #{tpu_custom_call.1} parent=5 // pred_check
        _
      $region10: #{tpu_custom_call.1} parent=5 // pred_check_branch
        %168 = sbr.rel (%p165) target = $region12
      $region11: #{tpu_custom_call.1} parent=5 // pred_region
        %s169 = ssub.s32 %s19, 1
        // Predicated region
        $region13: #{tpu_custom_call.1} parent=11 // pred_check
          %p170 = pneg %p66
        $region14: #{tpu_custom_call.1} parent=11 // pred_check_branch
          %172 = sbr.rel (%p170) target = $region16
        $region15: #{tpu_custom_call.1} parent=11 // pred_region
          %s174 = ssub.s32 1024, 1024
          %175 = vsyncadd [#allocation6], %s174
          %s176 = sshll.u32 [#allocation5], 4
          %s177 = int_to_ptr.vmem [resolvable:$true] %s176
          %182 = dma.hbm_to_vmem [thread:$0]  %s1, 1024, %s177, [#allocation6], 64, 64, 4
        $region16: #{tpu_custom_call.1} parent=11 // pred_fallthru
          _
        // Predicated region
        $region17: #{tpu_custom_call.1} parent=11 // pred_check
          %p183 = pneg %p87
        $region18: #{tpu_custom_call.1} parent=11 // pred_check_branch
          %185 = sbr.rel (%p183) target = $region20
        $region19: #{tpu_custom_call.1} parent=11 // pred_region
          %s187 = ssub.s32 16, 16
          %188 = vsyncadd [#allocation6], %s187
          %s190 = sshll.u32 [#allocation7], 4
          %s191 = int_to_ptr.vmem [resolvable:$true] %s190
          %193 = dma.hbm_to_vmem [thread:$0]  %s2, 16, %s191, [#allocation6]
        $region20: #{tpu_custom_call.1} parent=11 // pred_fallthru
          _
        // Predicated region
        $region21: #{tpu_custom_call.1} parent=11 // pred_check
          %p194 = pneg %p108
        $region22: #{tpu_custom_call.1} parent=11 // pred_check_branch
          %196 = sbr.rel (%p194) target = $region24
        $region23: #{tpu_custom_call.1} parent=11 // pred_region
          %s198 = ssub.s32 1024, 1024
          %199 = vsyncadd [#allocation9], %s198
          %s200 = sshll.u32 [#allocation8], 4
          %s201 = int_to_ptr.vmem [resolvable:$true] %s200
          %206 = dma.hbm_to_vmem [thread:$0]  %s3, 1024, %s201, [#allocation9], 64, 64, 4
        $region24: #{tpu_custom_call.1} parent=11 // pred_fallthru
          _
        // Predicated region
        $region25: #{tpu_custom_call.1} parent=11 // pred_check
          %p207 = pneg %p129
        $region26: #{tpu_custom_call.1} parent=11 // pred_check_branch
          %209 = sbr.rel (%p207) target = $region28
        $region27: #{tpu_custom_call.1} parent=11 // pred_region
          %s211 = ssub.s32 16, 16
          %212 = vsyncadd [#allocation9], %s211
          %s214 = sshll.u32 [#allocation10], 4
          %s215 = int_to_ptr.vmem [resolvable:$true] %s214
          %217 = dma.hbm_to_vmem [thread:$0]  %s4, 16, %s215, [#allocation9]
        $region28: #{tpu_custom_call.1} parent=11 // pred_fallthru
          _
      $region12: #{tpu_custom_call.1} parent=5 // pred_fallthru
        _
      %p218 = scmp.lt.s32.totalorder %s19, 4
      // Predicated region
      $region29: #{tpu_custom_call.1} parent=5 // pred_check
        %p219 = pneg %p218
      $region30: #{tpu_custom_call.1} parent=5 // pred_check_branch
        %221 = sbr.rel (%p219) target = $region32
      $region31: #{tpu_custom_call.1} parent=5 // pred_region
        // Predicated region
        $region33: #{tpu_custom_call.1} parent=31 // pred_check
          %p222 = pneg %p39
        $region34: #{tpu_custom_call.1} parent=31 // pred_check_branch
          %224 = sbr.rel (%p222) target = $region36
        $region35: #{tpu_custom_call.1} parent=31 // pred_region
          %s225 = sand.u32 %s29, 1
          %s226 = scalar_lea.sflag [#allocation3], %s225
          %s227 = sand.u32 %s29, 1
          %s228 = smul.addr %s227, 16
          %s229 = scalar_lea.vmem [#allocation2], %s228
          %s230 = smul.u32 2, %s19
          %s232 = ssub.s32 256, 256
          %233 = vsyncadd %s226, %s232
          %s234 = smul.addr %s230, 128
          %s235 = scalar_lea.hbm %s0, %s234
          %s236 = sshll.u32 %s229, 4
          %s237 = int_to_ptr.vmem [resolvable:$true] %s236
          %242 = dma.hbm_to_vmem [thread:$0]  %s235, 256, %s237, %s226, 128, 128, 8
        $region36: #{tpu_custom_call.1} parent=31 // pred_fallthru
          _
      $region32: #{tpu_custom_call.1} parent=5 // pred_fallthru
        _
      %p243 = scmp.le.s32.totalorder 1, %s19
      %p244 = scmp.lt.s32.totalorder %s19, 5
      %p245 = pnand %p243, %p244
      %p246 = pneg %p245
      // Predicated region
      $region37: #{tpu_custom_call.1} parent=5 // pred_check
        _
      $region38: #{tpu_custom_call.1} parent=5 // pred_check_branch
        %248 = sbr.rel (%p245) target = $region40
      $region39: #{tpu_custom_call.1} parent=5 // pred_region
        %s249 = ssub.s32 %s19, 1
        %s250 = sand.u32 %s32, 1
        %s251 = scalar_lea.sflag [#allocation3], %s250
        %s252 = sand.u32 %s32, 1
        %s253 = smul.addr %s252, 16
        %s254 = scalar_lea.vmem [#allocation2], %s253
        // Predicated region
        $region41: #{tpu_custom_call.1} parent=39 // pred_check
          %p255 = pneg %p45
        $region42: #{tpu_custom_call.1} parent=39 // pred_check_branch
          %257 = sbr.rel (%p255) target = $region44
        $region43: #{tpu_custom_call.1} parent=39 // pred_region
          %258 = dma.done %s251, 256
        $region44: #{tpu_custom_call.1} parent=39 // pred_fallthru
          _
        // Predicated region
        $region45: #{tpu_custom_call.1} parent=39 // pred_check
          %p259 = pneg %p66
        $region46: #{tpu_custom_call.1} parent=39 // pred_check_branch
          %261 = sbr.rel (%p259) target = $region48
        $region47: #{tpu_custom_call.1} parent=39 // pred_region
          %262 = dma.done [#allocation6], 1024
        $region48: #{tpu_custom_call.1} parent=39 // pred_fallthru
          _
        // Predicated region
        $region49: #{tpu_custom_call.1} parent=39 // pred_check
          %p263 = pneg %p87
        $region50: #{tpu_custom_call.1} parent=39 // pred_check_branch
          %265 = sbr.rel (%p263) target = $region52
        $region51: #{tpu_custom_call.1} parent=39 // pred_region
          %266 = dma.done [#allocation6], 16
        $region52: #{tpu_custom_call.1} parent=39 // pred_fallthru
          _
        // Predicated region
        $region53: #{tpu_custom_call.1} parent=39 // pred_check
          %p267 = pneg %p108
        $region54: #{tpu_custom_call.1} parent=39 // pred_check_branch
          %269 = sbr.rel (%p267) target = $region56
        $region55: #{tpu_custom_call.1} parent=39 // pred_region
          %270 = dma.done [#allocation9], 1024
        $region56: #{tpu_custom_call.1} parent=39 // pred_fallthru
          _
        // Predicated region
        $region57: #{tpu_custom_call.1} parent=39 // pred_check
          %p271 = pneg %p129
        $region58: #{tpu_custom_call.1} parent=39 // pred_check_branch
          %273 = sbr.rel (%p271) target = $region60
        $region59: #{tpu_custom_call.1} parent=39 // pred_region
          %274 = dma.done [#allocation9], 16
        $region60: #{tpu_custom_call.1} parent=39 // pred_fallthru
          _
        %s275 = sand.u32 %s32, 1
        %s276 = scalar_lea.sflag [#allocation3], %s275
        %s277 = sand.u32 %s32, 1
        %s278 = smul.addr %s277, 16
        %s279 = scalar_lea.vmem [#allocation2], %s278
        %p280 = pneg %p45
        %p281 = pneg %p42
        %p282 = pneg %p66
        %p283 = pneg %p63
        %p284 = pneg %p87
        %p285 = pneg %p84
        %p286 = pneg %p108
        %p287 = pneg %p105
        %p288 = pneg %p129
        %p289 = pneg %p126
        %p290 = pneg %p155
        %p291 = pneg %p152
        %s292 = sand.u32 %s142, 1
        %s293 = scalar_lea.sflag [#allocation4], %s292
        %s294 = sand.u32 %s142, 1
        %s295 = smul.addr %s294, 16
        %s296 = scalar_lea.vmem [#allocation11], %s295
        %s297 = smul.u32 2, %s24
        %s298 = smul.u32 2, %s24
        %v300 = vld [vmem:[%s254] sm:$0xff]
        %v301 = vld [vmem:[%s254 + $0x8] sm:$0xff]
        %v302 = vpack.c.bf16 %v301, %v300
        %v303 = vld [vmem:[#allocation5] sm:$0xf]
        %v304 = vld [vmem:[#allocation5 + $0x4] sm:$0xf]
        %v305 = vld [vmem:[#allocation5 + $0x8] sm:$0xf]
        %v306 = vld [vmem:[#allocation5 + $0xc] sm:$0xf]
        %v307 = vld [vmem:[#allocation5 + $0x10] sm:$0xf]
        %v308 = vld [vmem:[#allocation5 + $0x14] sm:$0xf]
        %v309 = vld [vmem:[#allocation5 + $0x18] sm:$0xf]
        %v310 = vld [vmem:[#allocation5 + $0x1c] sm:$0xf]
        %v311 = vld [vmem:[#allocation5 + $0x20] sm:$0xf]
        %v312 = vld [vmem:[#allocation5 + $0x24] sm:$0xf]
        %v313 = vld [vmem:[#allocation5 + $0x28] sm:$0xf]
        %v314 = vld [vmem:[#allocation5 + $0x2c] sm:$0xf]
        %v315 = vld [vmem:[#allocation5 + $0x30] sm:$0xf]
        %v316 = vld [vmem:[#allocation5 + $0x34] sm:$0xf]
        %v317 = vld [vmem:[#allocation5 + $0x38] sm:$0xf]
        %v318 = vld [vmem:[#allocation5 + $0x3c] sm:$0xf]
        %v319 = vld [vmem:[#allocation7] sm:$0x1]
        %v321 = vlaneseq
        %v322 = vshrl.u32 %v321, 7
        %v323 = vsub.s32 0, %v322
        %v324 = vrot.slane %v319, %v323
        %v342 = vunpack.c.l.b16 %v303
        %v343 = vunpack.c.l.b16 %v304
        %v344 = vunpack.c.l.b16 %v305
        %v345 = vunpack.c.l.b16 %v306
        %v346 = vunpack.c.l.b16 %v307
        %v347 = vunpack.c.l.b16 %v308
        %v348 = vunpack.c.l.b16 %v309
        %v349 = vunpack.c.l.b16 %v310
        %v350 = vunpack.c.l.b16 %v311
        %v351 = vunpack.c.l.b16 %v312
        %v352 = vunpack.c.l.b16 %v313
        %v353 = vunpack.c.l.b16 %v314
        %v354 = vunpack.c.l.b16 %v315
        %v355 = vunpack.c.l.b16 %v316
        %v356 = vunpack.c.l.b16 %v317
        %v357 = vunpack.c.l.b16 %v318
        %v358 = vpack.c.b16 %v343, %v342
        %v359 = vpack.c.b16 %v345, %v344
        %v360 = vpack.c.b16 %v347, %v346
        %v361 = vpack.c.b16 %v349, %v348
        %v362 = vpack.c.b16 %v351, %v350
        %v363 = vpack.c.b16 %v353, %v352
        %v364 = vpack.c.b16 %v355, %v354
        %v365 = vpack.c.b16 %v357, %v356
        %374 = vmatprep.subr.bf16.mxu0 0
        %375 = vmatpush1.bf16.msra.mxu0 %v358
        %376 = vmatprep.subr.bf16.mxu0 0
        %377 = vmatpush1.bf16.msra.mxu0 %v359
        %378 = vmatprep.subr.bf16.mxu0 0
        %379 = vmatpush1.bf16.msra.mxu0 %v360
        %380 = vmatprep.subr.bf16.mxu0 0
        %381 = vmatpush1.bf16.msra.mxu0 %v361
        %382 = vmatprep.subr.bf16.mxu0 0
        %383 = vmatpush1.bf16.msra.mxu0 %v362
        %384 = vmatprep.subr.bf16.mxu0 0
        %385 = vmatpush1.bf16.msra.mxu0 %v363
        %386 = vmatprep.subr.bf16.mxu0 0
        %387 = vmatpush1.bf16.msra.mxu0 %v364
        %388 = vmatprep.subr.bf16.mxu0 0
        %389 = vmatpush1.bf16.msra.mxu0 %v365
        %390 = vmatprep.subr.bf16.mxu0 0
        %391 = vmatpush1.bf16.msra.mxu0 0
        %392 = vmatprep.subr.bf16.mxu0 0
        %393 = vmatpush1.bf16.msra.mxu0 0
        %394 = vmatprep.subr.bf16.mxu0 0
        %395 = vmatpush1.bf16.msra.mxu0 0
        %396 = vmatprep.subr.bf16.mxu0 0
        %397 = vmatpush1.bf16.msra.mxu0 0
        %398 = vmatprep.subr.bf16.mxu0 0
        %399 = vmatpush1.bf16.msra.mxu0 0
        %400 = vmatprep.subr.bf16.mxu0 0
        %401 = vmatpush1.bf16.msra.mxu0 0
        %402 = vmatprep.subr.bf16.mxu0 0
        %403 = vmatpush1.bf16.msra.mxu0 0
        %404 = vmatprep.subr.bf16.mxu0 0
        %405 = vmatpush1.bf16.msra.mxu0 0
        %406 = vmatprep.mubr.bf16.mxu0 0
        %407 = vmatmul.mubr.bf16.gmra.mrb[0].mxu0 %v302
        %v408 = vpop.f32.mrb[0].mxu0
        %v409 = vadd.f32 %v324, %v408
        %v410 = vpop.f32.mrb[0].mxu0
        %v411 = vpop.f32.mrb[0].mxu0
        %v412 = vadd.f32 %v324, %v411
        %v413 = vpop.f32.mrb[0].mxu0
        %414 = vdwg.mxu0
        %v415 = vmax.f32 %v409, 0.0
        %v416 = vmax.f32 %v412, 0.0
        %v417 = vpack.c.bf16 %v416, %v415
        %v418 = vld [vmem:[#allocation8] sm:$0xf]
        %v419 = vld [vmem:[#allocation8 + $0x4] sm:$0xf]
        %v420 = vld [vmem:[#allocation8 + $0x8] sm:$0xf]
        %v421 = vld [vmem:[#allocation8 + $0xc] sm:$0xf]
        %v422 = vld [vmem:[#allocation8 + $0x10] sm:$0xf]
        %v423 = vld [vmem:[#allocation8 + $0x14] sm:$0xf]
        %v424 = vld [vmem:[#allocation8 + $0x18] sm:$0xf]
        %v425 = vld [vmem:[#allocation8 + $0x1c] sm:$0xf]
        %v426 = vld [vmem:[#allocation8 + $0x20] sm:$0xf]
        %v427 = vld [vmem:[#allocation8 + $0x24] sm:$0xf]
        %v428 = vld [vmem:[#allocation8 + $0x28] sm:$0xf]
        %v429 = vld [vmem:[#allocation8 + $0x2c] sm:$0xf]
        %v430 = vld [vmem:[#allocation8 + $0x30] sm:$0xf]
        %v431 = vld [vmem:[#allocation8 + $0x34] sm:$0xf]
        %v432 = vld [vmem:[#allocation8 + $0x38] sm:$0xf]
        %v433 = vld [vmem:[#allocation8 + $0x3c] sm:$0xf]
        %v434 = vld [vmem:[#allocation10] sm:$0x1]
        %v436 = vlaneseq
        %v437 = vshrl.u32 %v436, 7
        %v438 = vsub.s32 0, %v437
        %v439 = vrot.slane %v434, %v438
        %v457 = vunpack.c.l.b16 %v418
        %v458 = vunpack.c.l.b16 %v419
        %v459 = vunpack.c.l.b16 %v420
        %v460 = vunpack.c.l.b16 %v421
        %v461 = vunpack.c.l.b16 %v422
        %v462 = vunpack.c.l.b16 %v423
        %v463 = vunpack.c.l.b16 %v424
        %v464 = vunpack.c.l.b16 %v425
        %v465 = vunpack.c.l.b16 %v426
        %v466 = vunpack.c.l.b16 %v427
        %v467 = vunpack.c.l.b16 %v428
        %v468 = vunpack.c.l.b16 %v429
        %v469 = vunpack.c.l.b16 %v430
        %v470 = vunpack.c.l.b16 %v431
        %v471 = vunpack.c.l.b16 %v432
        %v472 = vunpack.c.l.b16 %v433
        %v473 = vpack.c.b16 %v458, %v457
        %v474 = vpack.c.b16 %v460, %v459
        %v475 = vpack.c.b16 %v462, %v461
        %v476 = vpack.c.b16 %v464, %v463
        %v477 = vpack.c.b16 %v466, %v465
        %v478 = vpack.c.b16 %v468, %v467
        %v479 = vpack.c.b16 %v470, %v469
        %v480 = vpack.c.b16 %v472, %v471
        %489 = vmatprep.subr.bf16.mxu0 0
        %490 = vmatpush1.bf16.msra.mxu0 %v473
        %491 = vmatprep.subr.bf16.mxu0 0
        %492 = vmatpush1.bf16.msra.mxu0 %v474
        %493 = vmatprep.subr.bf16.mxu0 0
        %494 = vmatpush1.bf16.msra.mxu0 %v475
        %495 = vmatprep.subr.bf16.mxu0 0
        %496 = vmatpush1.bf16.msra.mxu0 %v476
        %497 = vmatprep.subr.bf16.mxu0 0
        %498 = vmatpush1.bf16.msra.mxu0 %v477
        %499 = vmatprep.subr.bf16.mxu0 0
        %500 = vmatpush1.bf16.msra.mxu0 %v478
        %501 = vmatprep.subr.bf16.mxu0 0
        %502 = vmatpush1.bf16.msra.mxu0 %v479
        %503 = vmatprep.subr.bf16.mxu0 0
        %504 = vmatpush1.bf16.msra.mxu0 %v480
        %505 = vmatprep.subr.bf16.mxu0 0
        %506 = vmatpush1.bf16.msra.mxu0 0
        %507 = vmatprep.subr.bf16.mxu0 0
        %508 = vmatpush1.bf16.msra.mxu0 0
        %509 = vmatprep.subr.bf16.mxu0 0
        %510 = vmatpush1.bf16.msra.mxu0 0
        %511 = vmatprep.subr.bf16.mxu0 0
        %512 = vmatpush1.bf16.msra.mxu0 0
        %513 = vmatprep.subr.bf16.mxu0 0
        %514 = vmatpush1.bf16.msra.mxu0 0
        %515 = vmatprep.subr.bf16.mxu0 0
        %516 = vmatpush1.bf16.msra.mxu0 0
        %517 = vmatprep.subr.bf16.mxu0 0
        %518 = vmatpush1.bf16.msra.mxu0 0
        %519 = vmatprep.subr.bf16.mxu0 0
        %520 = vmatpush1.bf16.msra.mxu0 0
        %521 = vmatprep.mubr.bf16.mxu0 0
        %522 = vmatmul.mubr.bf16.gmra.mrb[0].mxu0 %v417
        %v523 = vpop.f32.mrb[0].mxu0
        %v524 = vadd.f32 %v439, %v523
        %v525 = vpop.f32.mrb[0].mxu0
        %v526 = vpop.f32.mrb[0].mxu0
        %v527 = vadd.f32 %v439, %v526
        %v528 = vpop.f32.mrb[0].mxu0
        %529 = vdwg.mxu0
        %v530 = vadd.f32 %v524, %v300
        %v531 = vadd.f32 %v527, %v301
        %v532 = vmax.f32 %v530, 0.0
        %v533 = vmax.f32 %v531, 0.0
        %534 = vst [vmem:[%s296] sm:$0xff] %v532
        %535 = vst [vmem:[%s296 + $0x8] sm:$0xff] %v533
        %s536 = sand.u32 %s142, 1
        %s537 = scalar_lea.sflag [#allocation4], %s536
        %s538 = sand.u32 %s142, 1
        %s539 = smul.addr %s538, 16
        %s540 = scalar_lea.vmem [#allocation11], %s539
        // Predicated region
        $region61: #{tpu_custom_call.1} parent=39 // pred_check
          %p541 = pneg %p152
        $region62: #{tpu_custom_call.1} parent=39 // pred_check_branch
          %543 = sbr.rel (%p541) target = $region64
        $region63: #{tpu_custom_call.1} parent=39 // pred_region
          %s544 = smul.u32 2, %s24
          %s546 = ssub.s32 256, 256
          %547 = vsyncadd %s537, %s546
          %s548 = smul.addr %s544, 128
          %s549 = scalar_lea.hbm %s5, %s548
          %s550 = sshll.u32 %s540, 4
          %s551 = int_to_ptr.vmem [resolvable:$true] %s550
          %556 = dma.vmem_to_hbm [thread:$0]  %s551, 256, %s549, %s537, 128, 128, 8
        $region64: #{tpu_custom_call.1} parent=39 // pred_fallthru
          _
      $region40: #{tpu_custom_call.1} parent=5 // pred_fallthru
        _
      %p557 = scmp.le.s32.totalorder 2, %s19
      // Predicated region
      $region65: #{tpu_custom_call.1} parent=5 // pred_check
        %p558 = pneg %p557
      $region66: #{tpu_custom_call.1} parent=5 // pred_check_branch
        %560 = sbr.rel (%p558) target = $region68
      $region67: #{tpu_custom_call.1} parent=5 // pred_region
        %s561 = ssub.s32 %s19, 2
        // Predicated region
        $region69: #{tpu_custom_call.1} parent=67 // pred_check
          %p562 = pneg %p158
        $region70: #{tpu_custom_call.1} parent=67 // pred_check_branch
          %564 = sbr.rel (%p562) target = $region72
        $region71: #{tpu_custom_call.1} parent=67 // pred_region
          %s565 = sand.u32 %s143, 1
          %s566 = scalar_lea.sflag [#allocation4], %s565
          %s567 = sand.u32 %s143, 1
          %s568 = smul.addr %s567, 16
          %s569 = scalar_lea.vmem [#allocation11], %s568
          %570 = dma.done %s566, 256
        $region72: #{tpu_custom_call.1} parent=67 // pred_fallthru
          _
      $region68: #{tpu_custom_call.1} parent=5 // pred_fallthru
        _
    $region6: #{tpu_custom_call.1} parent=1 // loop_footer
      %s23 = sadd.s32 1, %s19
    $region7: #{tpu_custom_call.1} parent=1 // loop_footer_branch
      %18 = sbr.rel target = $region3
    $region8: #{tpu_custom_call.1} parent=1 // loop_exit
      _
    %571 = vsyncpa [#allocation3], 1
    %s572 = scalar_lea.sflag [#allocation3], 1
    %573 = vsyncpa %s572, 1
    %574 = vsyncpa [#allocation6], 1
    %575 = vsyncpa [#allocation9], 1
    %576 = vsyncpa [#allocation4], 1
    %s577 = scalar_lea.sflag [#allocation4], 1
    %578 = vsyncpa %s577, 1

</llo_original>
